<compile_context>
chip_gen: v6e
topology: v6e:2x2x1
jax: 0.10.0
libtpu: 0.0.40
codegen_flags: <defaults>
</compile_context>

<pallas_src>
import math

import jax
import jax.numpy as jnp
from jax import lax
from jax.experimental import pallas as pl
from jax.experimental.pallas import tpu as pltpu

_LANES = 128          # vreg lane width
_SUBLANES = 8         # vreg sublane count
_MAX_TILE_ROWS = 4096  # 4096*128*4B = 2 MiB per f32 input tile
                       # -> 2 inputs x 2 pipeline buffers ~= 8 MiB VMEM per core


def _make_kernel(tr, rows_valid, tiles_per_core):
    """Build the squared-error partial-sum kernel for a fixed (static) tiling."""

    def kernel(pred_ref, true_ref, o_ref):
        c = pl.program_id(0)   # core-split axis ("parallel")
        i = pl.program_id(1)   # row-tile axis  ("arbitrary", reduction)

        @pl.when(i == 0)
        def _init():
            o_ref[...] = jnp.zeros_like(o_ref)

        # Native-dtype tiles were DMA'd; cast to f32 only in-register.
        d = pred_ref[...].astype(jnp.float32) - true_ref[...].astype(jnp.float32)
        dd = d * d

        # Unclamped tile index -> global row offset.  The index_map clamps the
        # *fetched* block into range; this unclamped offset drives the mask so
        # duplicated / partial boundary tiles contribute exactly 0.
        tile_idx = c * tiles_per_core + i
        row_start = tile_idx * tr
        needs_mask = row_start + tr > rows_valid

        def _accum(vals):
            # (tr,128) -> (tr//8, 8, 128) groups whole native vregs; sum(axis=0)
            # is pure VPU vreg adds -> one (8,128) partial per step accumulated
            # into the resident output block (no scratch, no big XLU epilogue).
            o_ref[...] += vals.reshape(
                tr // _SUBLANES, _SUBLANES, _LANES).sum(axis=0)[None]

        @pl.when(jnp.logical_not(needs_mask))
        def _interior():
            _accum(dd)

        @pl.when(needs_mask)
        def _boundary():
            row_ids = row_start + lax.broadcasted_iota(
                jnp.int32, (tr, _LANES), 0)
            _accum(jnp.where(row_ids < rows_valid, dd, 0.0))

    return kernel


def heatmap_regression_loss(y_pred, y_true):
    """Pallas-backed equivalent of HeatMapRegressionLoss.forward."""
    assert y_pred.shape == y_true.shape
    assert y_true.shape[1] == y_pred.shape[1]   # nb_joints match (as in the module)

    n = int(math.prod(y_true.shape))            # B * J * H * W * C

    # Flatten without a dtype cast (free reshape, native dtype DMA'd to VMEM).
    pred_flat = jnp.ravel(y_pred)
    true_flat = jnp.ravel(y_true)

    rem = n % _LANES
    if rem:
        # Uncommon slow path: element count not lane-aligned -> pad to a lane
        # multiple with zeros (0 - 0 contributes 0 to the sum).
        # TODO(synk): lane-level in-kernel masking would avoid this copy too.
        pad = _LANES - rem
        pred_flat = jnp.pad(pred_flat, (0, pad))
        true_flat = jnp.pad(true_flat, (0, pad))

    rows = pred_flat.shape[0] // _LANES
    pred2 = pred_flat.reshape(rows, _LANES)
    true2 = true_flat.reshape(rows, _LANES)

    # Row tiling: tr is always a multiple of 8 (sublane); partial boundary
    # tiles are masked inside the kernel instead of padded in HBM.
    tr = min(_MAX_TILE_ROWS, pl.cdiv(rows, _SUBLANES) * _SUBLANES)
    total_tiles = pl.cdiv(rows, tr)
    ncores = 2 if total_tiles > 1 else 1   # 2-TC split for v7x; no-op elsewhere
    tiles_per_core = pl.cdiv(total_tiles, ncores)

    def in_map(c, i):
        # Clamp so the DMA'd block index is always in range; the kernel masks
        # duplicated boundary tiles to zero via the unclamped index.
        return (jnp.minimum(c * tiles_per_core + i, total_tiles - 1), 0)

    itemsize = jnp.dtype(y_pred.dtype).itemsize
    partials = pl.pallas_call(
        _make_kernel(tr, rows, tiles_per_core),
        out_shape=jax.ShapeDtypeStruct((ncores, _SUBLANES, _LANES), jnp.float32),
        grid_spec=pltpu.PrefetchScalarGridSpec(
            num_scalar_prefetch=0,
            grid=(ncores, tiles_per_core),
            in_specs=[
                pl.BlockSpec((tr, _LANES), in_map),
                pl.BlockSpec((tr, _LANES), in_map),
            ],
            out_specs=pl.BlockSpec((1, _SUBLANES, _LANES), lambda c, i: (c, 0, 0)),
        ),
        compiler_params=pltpu.CompilerParams(
            # Core-split axis is parallel (megacore/v7x); row-tile axis is the
            # reduction into the resident output block.
            dimension_semantics=("parallel", "arbitrary"),
        ),
        cost_estimate=pl.CostEstimate(
            flops=3 * n,
            transcendentals=0,
            bytes_accessed=2 * itemsize * n + 4 * ncores * _SUBLANES * _LANES,
        ),
    )(pred2, true2)

    # Global mean == per-joint MSE averaged over joints (equal element counts).
    return jnp.sum(partials) / jnp.float32(n)


def _reference_loss(y_pred, y_true):
    """Pure-JAX transliteration of the PyTorch forward (per-joint MSE loop)."""
    b, j = y_true.shape[0], y_true.shape[1]
    p = y_pred.reshape(b, j, -1).astype(jnp.float32)
    t = y_true.reshape(b, j, -1).astype(jnp.float32)
    loss = jnp.float32(0.0)
    for joint_id in range(j):
        loss = loss + jnp.mean((p[:, joint_id, :] - t[:, joint_id, :]) ** 2)
    return loss / j


if __name__ == "__main__":
    # Small shapes consistent with the module:
    # (batch_size, nb_joints, h, w, c_out) = (2, 4, 16, 16, 1)
    B, J, H, W, C = 2, 4, 16, 16, 1

    key = jax.random.PRNGKey(0)
    kp, kt = jax.random.split(key)
    y_pred = jax.random.normal(kp, (B, J, H, W, C), jnp.float32)
    y_true = jax.random.normal(kt, (B, J, H, W, C), jnp.float32)

    loss = jax.block_until_ready(heatmap_regression_loss(y_pred, y_true))
    ref = jax.block_until_ready(_reference_loss(y_pred, y_true))

    assert loss.shape == ()
    assert jnp.allclose(loss, ref, atol=1e-5, rtol=1e-5), (loss, ref)

    print("KERNEL_OK")
</pallas_src>

<mosaic_0001>
module attributes {stable_mosaic.version = 11 : i64} {
  func.func @kernel(%arg0: i32, %arg1: i32, %arg2: memref<16x128xf32, #tpu.memory_space<vmem>>, %arg3: memref<16x128xf32, #tpu.memory_space<vmem>>, %arg4: memref<1x8x128xf32, #tpu.memory_space<vmem>>) attributes {dimension_semantics = [#tpu.dimension_semantics<parallel>, #tpu.dimension_semantics<arbitrary>], iteration_bounds = array<i64: 1, 1>, scalar_prefetch = 0 : i64, scratch_operands = 0 : i64, tpu.core_type = #tpu.core_type<tc>, window_params = [{transform_indices = @transform_0, window_bounds = array<i64: 16, 128>}, {transform_indices = @transform_1, window_bounds = array<i64: 16, 128>}, {transform_indices = @transform_2, window_bounds = array<i64: 1, 8, 128>}]} {
    %c0_i32 = arith.constant 0 : i32
    %0 = arith.cmpi eq, %arg1, %c0_i32 : i32
    %1 = arith.extui %0 : i1 to i32
    %c0_i32_0 = arith.constant 0 : i32
    %2 = arith.cmpi ne, %1, %c0_i32_0 : i32
    scf.if %2 {
      %cst = arith.constant 0.000000e+00 : f32
      %17 = vector.broadcast %cst : f32 to vector<1x8x128xf32>
      %c0_8 = arith.constant 0 : index
      %c0_9 = arith.constant 0 : index
      %c0_10 = arith.constant 0 : index
      %18 = vector.load %arg4[%c0_8, %c0_9, %c0_10] : memref<1x8x128xf32, #tpu.memory_space<vmem>>, vector<1x8x128xf32>
      tpu.vector_store %arg4[%c0_8, %c0_9, %c0_10], %17 {strides = array<i32>} : memref<1x8x128xf32, #tpu.memory_space<vmem>>, vector<1x8x128xf32>,
    } else {
    }
    %c0 = arith.constant 0 : index
    %c0_1 = arith.constant 0 : index
    %3 = vector.load %arg2[%c0, %c0_1] : memref<16x128xf32, #tpu.memory_space<vmem>>, vector<16x128xf32>
    %c0_2 = arith.constant 0 : index
    %c0_3 = arith.constant 0 : index
    %4 = vector.load %arg3[%c0_2, %c0_3] : memref<16x128xf32, #tpu.memory_space<vmem>>, vector<16x128xf32>
    %5 = arith.subf %3, %4 : vector<16x128xf32>
    %6 = arith.mulf %5, %5 : vector<16x128xf32>
    %c1_i32 = arith.constant 1 : i32
    %7 = arith.muli %arg0, %c1_i32 : i32
    %8 = arith.addi %7, %arg1 : i32
    %c16_i32 = arith.constant 16 : i32
    %9 = arith.muli %8, %c16_i32 : i32
    %c16_i32_4 = arith.constant 16 : i32
    %10 = arith.addi %9, %c16_i32_4 : i32
    %c16_i32_5 = arith.constant 16 : i32
    %11 = arith.cmpi sgt, %10, %c16_i32_5 : i32
    %true = arith.constant true
    %12 = arith.xori %11, %true : i1
    %13 = arith.extui %12 : i1 to i32
    %c0_i32_6 = arith.constant 0 : i32
    %14 = arith.cmpi ne, %13, %c0_i32_6 : i32
    scf.if %14 {
      %c0_8 = arith.constant 0 : index
      %c0_9 = arith.constant 0 : index
      %c0_10 = arith.constant 0 : index
      %17 = vector.load %arg4[%c0_8, %c0_9, %c0_10] : memref<1x8x128xf32, #tpu.memory_space<vmem>>, vector<1x8x128xf32>
      %18 = vector.shape_cast %6 : vector<16x128xf32> to vector<2x8x128xf32>
      %cst = arith.constant dense<0.000000e+00> : vector<8x128xf32>
      %19 = vector.multi_reduction <add>, %18, %cst [0] : vector<2x8x128xf32> to vector<8x128xf32>
      %20 = vector.shape_cast %19 : vector<8x128xf32> to vector<1x8x128xf32>
      %21 = arith.addf %17, %20 : vector<1x8x128xf32>
      %c0_11 = arith.constant 0 : index
      %c0_12 = arith.constant 0 : index
      %c0_13 = arith.constant 0 : index
      %22 = vector.load %arg4[%c0_11, %c0_12, %c0_13] : memref<1x8x128xf32, #tpu.memory_space<vmem>>, vector<1x8x128xf32>
      tpu.vector_store %arg4[%c0_11, %c0_12, %c0_13], %21 {strides = array<i32>} : memref<1x8x128xf32, #tpu.memory_space<vmem>>, vector<1x8x128xf32>,
    } else {
    }
    %15 = arith.extui %11 : i1 to i32
    %c0_i32_7 = arith.constant 0 : i32
    %16 = arith.cmpi ne, %15, %c0_i32_7 : i32
    scf.if %16 {
      %17 = tpu.iota {dimensions = array<i32: 0>} : vector<16x128xi32>
      %18 = vector.broadcast %9 : i32 to vector<16x128xi32>
      %19 = arith.addi %18, %17 : vector<16x128xi32>
      %c16_i32_8 = arith.constant 16 : i32
      %20 = vector.broadcast %c16_i32_8 : i32 to vector<16x128xi32>
      %21 = arith.cmpi slt, %19, %20 : vector<16x128xi32>
      %cst = arith.constant 0.000000e+00 : f32
      %22 = vector.broadcast %cst : f32 to vector<16x128xf32>
      %23 = arith.select %21, %6, %22 : vector<16x128xi1>, vector<16x128xf32>
      %c0_9 = arith.constant 0 : index
      %c0_10 = arith.constant 0 : index
      %c0_11 = arith.constant 0 : index
      %24 = vector.load %arg4[%c0_9, %c0_10, %c0_11] : memref<1x8x128xf32, #tpu.memory_space<vmem>>, vector<1x8x128xf32>
      %25 = vector.shape_cast %23 : vector<16x128xf32> to vector<2x8x128xf32>
      %cst_12 = arith.constant dense<0.000000e+00> : vector<8x128xf32>
      %26 = vector.multi_reduction <add>, %25, %cst_12 [0] : vector<2x8x128xf32> to vector<8x128xf32>
      %27 = vector.shape_cast %26 : vector<8x128xf32> to vector<1x8x128xf32>
      %28 = arith.addf %24, %27 : vector<1x8x128xf32>
      %c0_13 = arith.constant 0 : index
      %c0_14 = arith.constant 0 : index
      %c0_15 = arith.constant 0 : index
      %29 = vector.load %arg4[%c0_13, %c0_14, %c0_15] : memref<1x8x128xf32, #tpu.memory_space<vmem>>, vector<1x8x128xf32>
      tpu.vector_store %arg4[%c0_13, %c0_14, %c0_15], %28 {strides = array<i32>} : memref<1x8x128xf32, #tpu.memory_space<vmem>>, vector<1x8x128xf32>,
    } else {
    }
    return
  }
  func.func @transform_0(%arg0: i32, %arg1: i32) -> (i32, i32) {
    %c1_i32 = arith.constant 1 : i32
    %0 = arith.muli %arg0, %c1_i32 : i32
    %1 = arith.addi %0, %arg1 : i32
    %c0_i32 = arith.constant 0 : i32
    %2 = arith.minsi %1, %c0_i32 : i32
    %c0_i32_0 = arith.constant 0 : i32
    %c0_i32_1 = arith.constant 0 : i32
    return %2, %c0_i32_0 : i32, i32
  }
  func.func @transform_1(%arg0: i32, %arg1: i32) -> (i32, i32) {
    %c1_i32 = arith.constant 1 : i32
    %0 = arith.muli %arg0, %c1_i32 : i32
    %1 = arith.addi %0, %arg1 : i32
    %c0_i32 = arith.constant 0 : i32
    %2 = arith.minsi %1, %c0_i32 : i32
    %c0_i32_0 = arith.constant 0 : i32
    %c0_i32_1 = arith.constant 0 : i32
    return %2, %c0_i32_0 : i32, i32
  }
  func.func @transform_2(%arg0: i32, %arg1: i32) -> (i32, i32, i32) {
    %c0_i32 = arith.constant 0 : i32
    %c0_i32_0 = arith.constant 0 : i32
    %c0_i32_1 = arith.constant 0 : i32
    return %arg0, %c0_i32, %c0_i32_0 : i32, i32, i32
  }
}

</mosaic_0001>

<llo_original>
// kernel: tpu_custom_call.1
$region0: #{tpu_custom_call.1}
  #allocation0 [shape = 'u32[]', space=smem, size = 0x4, offset = 0x4, fixed_abs, tag = 'smem constant byte address 0x4 - core index']
  #allocation1 [shape = 'u32[144,128]{1,0:T(1,128)}', space=vmem, size = 0x12000, scoped, tag = 'internal scratch']
  %s0 = inlined_call_operand.hbm [shape: f32[16,128], index: 0, kind: input, shape index: {}]
  %s1 = inlined_call_operand.hbm [shape: f32[16,128], index: 1, kind: input, shape index: {}]
  %s2 = inlined_call_operand.hbm [shape: f32[1,8,128], index: 2, kind: output, shape index: {}]
  %s3 = sld [smem:[#allocation0]]
  $region38: #{tpu_custom_call.1} parent=0
    _
  %s5 = ssub.s32 1, %s3
  %s6 = scalar_select 0, %s5, %s3
  $region1: #{tpu_custom_call.1} parent=0
    #allocation2 [shape = 'u8[8192]{0}', space=vmem, size = 0x2000, scoped, tag = 'input window, operand 0, single buffered']
    #allocation3 [shape = 's32[1]{0}', space=sflag, size = 0x4, scoped, tag = 'scoped memory for tpu_custom_call.1']
    #allocation4 [shape = 's32[1]{0}', space=sflag, size = 0x4, scoped, tag = 'scoped memory for tpu_custom_call.1']
    #allocation5 [shape = 'u8[8192]{0}', space=vmem, size = 0x2000, scoped, tag = 'input window, operand 1, single buffered']
    #allocation6 [shape = 's32[1]{0}', space=sflag, size = 0x4, scoped, tag = 'scoped memory for tpu_custom_call.1']
    #allocation7 [shape = 'u8[4096]{0}', space=vmem, size = 0x1000, scoped, tag = 'output window, operand 0, single buffered']
    %7 = vsyncpa [#allocation3], 0
    %8 = vsyncpa [#allocation6], 0
    %9 = vsyncpa [#allocation4], 0
    // Predicated region
    $region2: #{tpu_custom_call.1} parent=1 // pred_check
      _
    $region3: #{tpu_custom_call.1} parent=1 // pred_check_branch
      %11 = sbr.rel (0) target = $region5
    $region4: #{tpu_custom_call.1} parent=1 // pred_region
      %s12 = sadd.s32 0, 0
      %p13 = scmp.lt.s32.totalorder %s12, 0
      %s14 = scalar_select %p13, %s12, 0
      %s15 = smul.u32 2, %s14
      %s17 = ssub.s32 256, 256
      %18 = vsyncadd [#allocation3], %s17
      %s19 = smul.addr %s15, 128
      %s20 = scalar_lea.hbm %s0, %s19
      %s21 = sshll.u32 [#allocation2], 4
      %s22 = int_to_ptr.vmem [resolvable:$true] %s21
      %27 = dma.hbm_to_vmem [thread:$0]  %s20, 256, %s22, [#allocation3], 128, 128, 8
    $region5: #{tpu_custom_call.1} parent=1 // pred_fallthru
      _
    // Predicated region
    $region6: #{tpu_custom_call.1} parent=1 // pred_check
      _
    $region7: #{tpu_custom_call.1} parent=1 // pred_check_branch
      %29 = sbr.rel (0) target = $region9
    $region8: #{tpu_custom_call.1} parent=1 // pred_region
      %s30 = sadd.s32 0, 0
      %p31 = scmp.lt.s32.totalorder %s30, 0
      %s32 = scalar_select %p31, %s30, 0
      %s33 = smul.u32 2, %s32
      %s35 = ssub.s32 256, 256
      %36 = vsyncadd [#allocation6], %s35
      %s37 = smul.addr %s33, 128
      %s38 = scalar_lea.hbm %s1, %s37
      %s39 = sshll.u32 [#allocation5], 4
      %s40 = int_to_ptr.vmem [resolvable:$true] %s39
      %45 = dma.hbm_to_vmem [thread:$0]  %s38, 256, %s40, [#allocation6], 128, 128, 8
    $region9: #{tpu_custom_call.1} parent=1 // pred_fallthru
      _
    // Predicated region
    $region10: #{tpu_custom_call.1} parent=1 // pred_check
      _
    $region11: #{tpu_custom_call.1} parent=1 // pred_check_branch
      %47 = sbr.rel (0) target = $region13
    $region12: #{tpu_custom_call.1} parent=1 // pred_region
      %48 = dma.done [#allocation3], 256
    $region13: #{tpu_custom_call.1} parent=1 // pred_fallthru
      _
    // Predicated region
    $region14: #{tpu_custom_call.1} parent=1 // pred_check
      _
    $region15: #{tpu_custom_call.1} parent=1 // pred_check_branch
      %50 = sbr.rel (0) target = $region17
    $region16: #{tpu_custom_call.1} parent=1 // pred_region
      %51 = dma.done [#allocation6], 256
    $region17: #{tpu_custom_call.1} parent=1 // pred_fallthru
      _
    %s52 = sadd.s32 0, 0
    %p53 = scmp.lt.s32.totalorder %s52, 0
    %s54 = scalar_select %p53, %s52, 0
    %s55 = smul.u32 2, %s54
    %s56 = sadd.s32 0, 0
    %p57 = scmp.lt.s32.totalorder %s56, 0
    %s58 = scalar_select %p57, %s56, 0
    %s59 = smul.u32 2, %s58
    %p60 = scmp.eq.s32.totalorder 0, 0
    // Predicated region
    $region18: #{tpu_custom_call.1} parent=1 // pred_check
      %p61 = pneg %p60
    $region19: #{tpu_custom_call.1} parent=1 // pred_check_branch
      %63 = sbr.rel (%p61) target = $region21
    $region20: #{tpu_custom_call.1} parent=1 // pred_region
      %64 = vst [vmem:[#allocation7] sm:$0xff] 0.0
    $region21: #{tpu_custom_call.1} parent=1 // pred_fallthru
      _
    %v65 = vld [vmem:[#allocation2] sm:$0xff]
    %v66 = vld [vmem:[#allocation2 + $0x8] sm:$0xff]
    %v67 = vld [vmem:[#allocation5] sm:$0xff]
    %v68 = vld [vmem:[#allocation5 + $0x8] sm:$0xff]
    %v69 = vsub.f32 %v65, %v67
    %v70 = vsub.f32 %v66, %v68
    %v71 = vmul.f32 %v69, %v69
    %v72 = vmul.f32 %v70, %v70
    %s73 = sadd.s32 0, 0
    %s74 = smul.u32 %s73, 16
    %s75 = sadd.s32 %s74, 16
    %p76 = scmp.gt.s32.totalorder %s75, 16
    %p77 = scmp.le.s32.totalorder %s75, 16
    // Predicated region
    $region22: #{tpu_custom_call.1} parent=1 // pred_check
      %p78 = pneg %p77
    $region23: #{tpu_custom_call.1} parent=1 // pred_check_branch
      %80 = sbr.rel (%p78) target = $region25
    $region24: #{tpu_custom_call.1} parent=1 // pred_region
      %v81 = vld [vmem:[#allocation7] sm:$0xff]
      %v82 = vadd.f32 %v71, %v72
      %v83 = vadd.f32 %v81, %v82
      %84 = vst [vmem:[#allocation7] sm:$0xff] %v83
    $region25: #{tpu_custom_call.1} parent=1 // pred_fallthru
      _
    // Predicated region
    $region26: #{tpu_custom_call.1} parent=1 // pred_check
      %p85 = pneg %p76
    $region27: #{tpu_custom_call.1} parent=1 // pred_check_branch
      %87 = sbr.rel (%p85) target = $region29
    $region28: #{tpu_custom_call.1} parent=1 // pred_region
      %v88 = vlaneseq
      %v89 = vshrl.u32 %v88, 7
      %v90 = vadd.s32 %v89, 8
      %v91 = vstv %s74
      %v92 = vadd.s32 %v91, %v89
      %v93 = vadd.s32 %v91, %v90
      %vm94 = vcmp.lt.s32.totalorder %v92, 16
      %vm95 = vcmp.lt.s32.totalorder %v93, 16
      %v96 = vsel %vm94, %v71, 0.0
      %v97 = vsel %vm95, %v72, 0.0
      %v98 = vld [vmem:[#allocation7] sm:$0xff]
      %v99 = vadd.f32 %v96, %v97
      %v100 = vadd.f32 %v98, %v99
      %101 = vst [vmem:[#allocation7] sm:$0xff] %v100
    $region29: #{tpu_custom_call.1} parent=1 // pred_fallthru
      _
    // Predicated region
    $region30: #{tpu_custom_call.1} parent=1 // pred_check
      _
    $region31: #{tpu_custom_call.1} parent=1 // pred_check_branch
      %103 = sbr.rel (0) target = $region33
    $region32: #{tpu_custom_call.1} parent=1 // pred_region
      %s105 = ssub.s32 128, 128
      %106 = vsyncadd [#allocation4], %s105
      %s108 = sshll.u32 [#allocation7], 4
      %s109 = int_to_ptr.vmem [resolvable:$true] %s108
      %111 = dma.vmem_to_hbm [thread:$0]  %s109, 128, %s2, [#allocation4]
    $region33: #{tpu_custom_call.1} parent=1 // pred_fallthru
      _
    // Predicated region
    $region34: #{tpu_custom_call.1} parent=1 // pred_check
      _
    $region35: #{tpu_custom_call.1} parent=1 // pred_check_branch
      %113 = sbr.rel (0) target = $region37
    $region36: #{tpu_custom_call.1} parent=1 // pred_region
      %114 = dma.done [#allocation4], 128
    $region37: #{tpu_custom_call.1} parent=1 // pred_fallthru
      _
    %115 = vsyncpa [#allocation3], 1
    %116 = vsyncpa [#allocation6], 1
    %117 = vsyncpa [#allocation4], 1

</llo_original>
